<compile_context>
chip_gen: v7x
topology: tpu7x:2x2x1
jax: 0.10.0
libtpu: 0.0.40
codegen_flags: <defaults>
</compile_context>

<pallas_src>
import functools

import jax
import jax.numpy as jnp
from jax.experimental import pallas as pl
from jax.experimental.pallas import tpu as pltpu

# --- Hyperparameters (small, consistent with the module's forward) ----------
# Constraint from the module: conv output length must be 93, i.e.
# prot_embedding_dim - cnn_kernel_size + 1 == 93.
B = 2
VOCAB = 25                      # input_dim; padding_idx = VOCAB - 1
VBLK = 32                       # vocab block padded to 32 (lane-friendly)
E = 95                          # prot_embedding_dim
K = 3                           # cnn_kernel_size
CNN_PROT_LENGTH = 6
CIN = CNN_PROT_LENGTH + 2       # conv in_channels == token-sequence length of x
COUT = 4                        # cnn_out_channels
P = E - K + 1                   # conv output length (= 93, hardcoded in module)
EOUT = E                        # fc_prot output dim == prot_embedding_dim
EOUT_PAD = 128                  # 95 -> 128 (lane-dense z store)
SEQ_PAIRS = True
NSEQ = 2 if SEQ_PAIRS else 1
TWO_B = NSEQ * B                # stacked rows: [seq1_b0..seq1_bB-1, seq2_...]
CP = COUT * P                   # 372  (one sequence's flat conv output)
CPP = 384                       # CP padded to a 128 multiple
CINV = CIN * VBLK               # 256  (one-hot LHS width)
assert P == 93
assert SEQ_PAIRS and NSEQ == 2  # kernel below is written for the seq-pairs path


def prot_cnn2_kernel(x1_ref, x2_ref, m_ref, cb_ref, wfc_ref, fcb_ref,
                     hslab_ref, z_ref):
    # x1_ref/x2_ref : (B, CIN)           int32 token ids      (SMEM)
    # m_ref         : (CINV, CPP)        bf16  fused emb+conv weight
    # cb_ref        : (1, CPP)           f32   conv bias, flat [oc*P + p], pad=0
    # wfc_ref       : (2*CPP, EOUT_PAD)  f32   fc weight, pad rows/cols = 0
    # fcb_ref       : (1, EOUT_PAD)      f32   fc bias, pad = 0
    # hslab_ref     : (B, 2*CPP)         f32   [h1 | 0pad | h2 | 0pad]
    # z_ref         : (B, EOUT_PAD)      f32

    # Build the stacked one-hot LHS from SMEM token ids (rows 0..B-1 = seq1,
    # rows B..2B-1 = seq2): onehot[r, i*VBLK + v] = (ids[r, i] == v).
    row = jax.lax.broadcasted_iota(jnp.int32, (TWO_B, CINV), 0)
    col = jax.lax.broadcasted_iota(jnp.int32, (TWO_B, CINV), 1)
    oh = jnp.zeros((TWO_B, CINV), jnp.float32)
    for s, ids_ref in enumerate((x1_ref, x2_ref)):
        for b in range(B):
            r = s * B + b
            hit = jnp.zeros((TWO_B, CINV), jnp.bool_)
            for i in range(CIN):
                hit = hit | (col == ids_ref[b, i] + i * VBLK)   # scalar SMEM read
            oh = oh + jnp.where((row == r) & hit, 1.0, 0.0)
    onehot = oh.astype(jnp.bfloat16)

    # Embedding + Conv1d for BOTH sequences: ONE bf16 MXU matmul, f32 accum.
    h2b = jnp.dot(onehot, m_ref[...], preferred_element_type=jnp.float32)
    h2b = h2b + cb_ref[...]                                      # (2B, CPP)

    # One lane-dense output slab: [h1 (372) | 0pad | h2 (372) | 0pad].
    hslab = jnp.concatenate([h2b[0:B, :], h2b[B:TWO_B, :]], axis=1)  # (B, 2*CPP)
    hslab_ref[...] = hslab

    # fc_prot: ONE f32 matmul (no bf16 re-rounding of h), single z store.
    z_ref[...] = (jnp.dot(hslab, wfc_ref[...],
                          preferred_element_type=jnp.float32) + fcb_ref[...])


def pack_params(params):
    """One-time parameter packing (outside the per-call path)."""
    emb, conv_w, conv_b, fc_w, fc_b = (params['emb'], params['conv_w'],
                                       params['conv_b'], params['fc_w'],
                                       params['fc_b'])

    # Fused embedding + conv weight:
    #   M[i*VBLK + v, o*P + p] = sum_k conv_w[o, i, k] * emb[v, p + k]
    win = jnp.arange(P)[:, None] + jnp.arange(K)[None, :]          # (P, K)
    embw = emb[:, win]                                             # (VOCAB, P, K)
    m = jnp.einsum('oik,vpk->ivop', conv_w, embw)                  # (CIN,VOCAB,COUT,P)
    m = jnp.pad(m, ((0, 0), (0, VBLK - VOCAB), (0, 0), (0, 0)))    # pad vocab->VBLK
    m = m.reshape(CINV, CP)
    m = jnp.pad(m, ((0, 0), (0, CPP - CP)))                        # pad CP->CPP

    cb = jnp.pad(jnp.repeat(conv_b, P), (0, CPP - CP)).reshape(1, CPP)

    # fc weight laid out to match the padded hslab columns (torch: z = h @ W.T).
    wt = fc_w.T                                                    # (2*CP, EOUT)
    wfc = jnp.zeros((2 * CPP, EOUT_PAD), jnp.float32)
    wfc = wfc.at[0:CP, 0:EOUT].set(wt[:CP])
    wfc = wfc.at[CPP:CPP + CP, 0:EOUT].set(wt[CP:])
    fcb = jnp.pad(fc_b, (0, EOUT_PAD - EOUT)).reshape(1, EOUT_PAD)

    return dict(M=m.astype(jnp.bfloat16),
                cb=cb.astype(jnp.float32),
                wfc=wfc.astype(jnp.float32),
                fcb=fcb.astype(jnp.float32))


def prot_cnn2_forward(x1, lengths1, x2, lengths2, packed):
    # lengths1 / lengths2 are unused by the PyTorch forward; kept for parity.
    del lengths1, lengths2

    hslab, z_pad = pl.pallas_call(
        prot_cnn2_kernel,
        out_shape=(jax.ShapeDtypeStruct((B, 2 * CPP), jnp.float32),
                   jax.ShapeDtypeStruct((B, EOUT_PAD), jnp.float32)),
        in_specs=[pl.BlockSpec(memory_space=pltpu.MemorySpace.SMEM),   # x1 ids
                  pl.BlockSpec(memory_space=pltpu.MemorySpace.SMEM),   # x2 ids
                  pl.BlockSpec(memory_space=pltpu.MemorySpace.VMEM),   # M
                  pl.BlockSpec(memory_space=pltpu.MemorySpace.VMEM),   # cb
                  pl.BlockSpec(memory_space=pltpu.MemorySpace.VMEM),   # wfc
                  pl.BlockSpec(memory_space=pltpu.MemorySpace.VMEM)],  # fcb
        out_specs=(pl.BlockSpec(memory_space=pltpu.MemorySpace.VMEM),
                   pl.BlockSpec(memory_space=pltpu.MemorySpace.VMEM)),
    )(x1.astype(jnp.int32), x2.astype(jnp.int32),
      packed['M'], packed['cb'], packed['wfc'], packed['fcb'])

    # Strip the zero pad columns (372->384, 95->128) added for lane-dense
    # stores; this reproduces torch.cat((h1.view(-1,372), h2.view(-1,372)), 1).
    h = jnp.concatenate([hslab[:, :CP], hslab[:, CPP:CPP + CP]], axis=1)
    z = z_pad[:, :EOUT]
    return h, z


def ref_forward(x1, x2, params):
    """Pure-JAX f32 reference of the PyTorch forward (for verification)."""
    emb, conv_w, conv_b, fc_w, fc_b = (params['emb'], params['conv_w'],
                                       params['conv_b'], params['fc_w'],
                                       params['fc_b'])

    def branch(x):
        h = emb[x]                                              # (B, CIN, E)
        o = jnp.zeros((B, COUT, P), jnp.float32)
        for kk in range(K):
            o = o + jnp.einsum('oi,bip->bop', conv_w[:, :, kk], h[:, :, kk:kk + P])
        o = o + conv_b[None, :, None]
        return o.reshape(B, COUT * P)

    h1 = branch(x1)
    h2 = branch(x2)
    hcat = jnp.concatenate([h1, h2], axis=1) if SEQ_PAIRS else h1
    z = hcat @ fc_w.T + fc_b[None, :]
    return hcat, z


if __name__ == "__main__":
    key = jax.random.PRNGKey(0)
    k_emb, k_cw, k_cb, k_fw, k_fb, k_x1, k_x2 = jax.random.split(key, 7)

    # Deterministic synthetic parameters (shapes from the module's __init__).
    emb = 0.1 * jax.random.normal(k_emb, (VOCAB, E), jnp.float32)
    emb = emb.at[VOCAB - 1].set(0.0)                    # padding_idx row zeroed
    conv_w = 0.1 * jax.random.normal(k_cw, (COUT, CIN, K), jnp.float32)
    conv_b = 0.1 * jax.random.normal(k_cb, (COUT,), jnp.float32)
    fc_w = 0.05 * jax.random.normal(k_fw, (EOUT, NSEQ * COUT * P), jnp.float32)
    fc_b = 0.05 * jax.random.normal(k_fb, (EOUT,), jnp.float32)
    params = dict(emb=emb, conv_w=conv_w, conv_b=conv_b, fc_w=fc_w, fc_b=fc_b)

    # Implicit contract: the padding_idx embedding row must be zero (torch
    # maintains it as zero); assert at pack time (review concern).
    assert bool(jnp.all(params['emb'][VOCAB - 1] == 0.0))

    # One-time weight packing (outside the per-call path).
    packed = jax.tree_util.tree_map(jax.block_until_ready, pack_params(params))

    # Inputs: token indices of length CIN (conv in_channels), plus unused lengths.
    x1 = jax.random.randint(k_x1, (B, CIN), 0, VOCAB)
    x2 = jax.random.randint(k_x2, (B, CIN), 0, VOCAB)
    lengths1 = jnp.full((B,), CIN, jnp.int32)
    lengths2 = jnp.full((B,), CIN, jnp.int32)

    fwd = jax.jit(functools.partial(prot_cnn2_forward, packed=packed))
    h, z = fwd(x1, lengths1, x2, lengths2)
    jax.block_until_ready((h, z))

    h_ref, z_ref = ref_forward(x1, x2, params)
    assert h.shape == (B, NSEQ * COUT * 93), h.shape
    assert z.shape == (B, EOUT), z.shape
    assert bool(jnp.allclose(h, h_ref, atol=1e-2, rtol=1e-2))
    assert bool(jnp.allclose(z, z_ref, atol=1e-2, rtol=1e-2))
    print("KERNEL_OK")
</pallas_src>

<mosaic_0001>
module attributes {stable_mosaic.version = 11 : i64} {
  func.func @prot_cnn2_kernel(%arg0: memref<2x8xi32, #tpu.memory_space<smem>>, %arg1: memref<2x8xi32, #tpu.memory_space<smem>>, %arg2: memref<256x384xbf16, #tpu.memory_space<vmem>>, %arg3: memref<1x384xf32, #tpu.memory_space<vmem>>, %arg4: memref<768x128xf32, #tpu.memory_space<vmem>>, %arg5: memref<1x128xf32, #tpu.memory_space<vmem>>, %arg6: memref<2x768xf32, #tpu.memory_space<vmem>>, %arg7: memref<2x128xf32, #tpu.memory_space<vmem>>) attributes {dimension_semantics = [], scalar_prefetch = 0 : i64, scratch_operands = 0 : i64, tpu.core_type = #tpu.core_type<tc>} {
    %0 = tpu.iota {dimensions = array<i32: 0>} : vector<4x256xi32>
    %1 = tpu.iota {dimensions = array<i32: 1>} : vector<4x256xi32>
    %cst = arith.constant 0.000000e+00 : f32
    %2 = vector.broadcast %cst : f32 to vector<4x256xf32>
    %false = arith.constant false
    %3 = vector.broadcast %false : i1 to vector<4x256xi1>
    %c0 = arith.constant 0 : index
    %c0_0 = arith.constant 0 : index
    %4 = memref.load %arg0[%c0, %c0_0] : memref<2x8xi32, #tpu.memory_space<smem>>
    %c0_i32 = arith.constant 0 : i32
    %5 = arith.addi %4, %c0_i32 : i32
    %6 = vector.broadcast %5 : i32 to vector<4x256xi32>
    %7 = arith.cmpi eq, %1, %6 : vector<4x256xi32>
    %8 = arith.ori %3, %7 : vector<4x256xi1>
    %c0_1 = arith.constant 0 : index
    %c1 = arith.constant 1 : index
    %9 = memref.load %arg0[%c0_1, %c1] : memref<2x8xi32, #tpu.memory_space<smem>>
    %c32_i32 = arith.constant 32 : i32
    %10 = arith.addi %9, %c32_i32 : i32
    %11 = vector.broadcast %10 : i32 to vector<4x256xi32>
    %12 = arith.cmpi eq, %1, %11 : vector<4x256xi32>
    %13 = arith.ori %8, %12 : vector<4x256xi1>
    %c0_2 = arith.constant 0 : index
    %c2 = arith.constant 2 : index
    %14 = memref.load %arg0[%c0_2, %c2] : memref<2x8xi32, #tpu.memory_space<smem>>
    %c64_i32 = arith.constant 64 : i32
    %15 = arith.addi %14, %c64_i32 : i32
    %16 = vector.broadcast %15 : i32 to vector<4x256xi32>
    %17 = arith.cmpi eq, %1, %16 : vector<4x256xi32>
    %18 = arith.ori %13, %17 : vector<4x256xi1>
    %c0_3 = arith.constant 0 : index
    %c3 = arith.constant 3 : index
    %19 = memref.load %arg0[%c0_3, %c3] : memref<2x8xi32, #tpu.memory_space<smem>>
    %c96_i32 = arith.constant 96 : i32
    %20 = arith.addi %19, %c96_i32 : i32
    %21 = vector.broadcast %20 : i32 to vector<4x256xi32>
    %22 = arith.cmpi eq, %1, %21 : vector<4x256xi32>
    %23 = arith.ori %18, %22 : vector<4x256xi1>
    %c0_4 = arith.constant 0 : index
    %c4 = arith.constant 4 : index
    %24 = memref.load %arg0[%c0_4, %c4] : memref<2x8xi32, #tpu.memory_space<smem>>
    %c128_i32 = arith.constant 128 : i32
    %25 = arith.addi %24, %c128_i32 : i32
    %26 = vector.broadcast %25 : i32 to vector<4x256xi32>
    %27 = arith.cmpi eq, %1, %26 : vector<4x256xi32>
    %28 = arith.ori %23, %27 : vector<4x256xi1>
    %c0_5 = arith.constant 0 : index
    %c5 = arith.constant 5 : index
    %29 = memref.load %arg0[%c0_5, %c5] : memref<2x8xi32, #tpu.memory_space<smem>>
    %c160_i32 = arith.constant 160 : i32
    %30 = arith.addi %29, %c160_i32 : i32
    %31 = vector.broadcast %30 : i32 to vector<4x256xi32>
    %32 = arith.cmpi eq, %1, %31 : vector<4x256xi32>
    %33 = arith.ori %28, %32 : vector<4x256xi1>
    %c0_6 = arith.constant 0 : index
    %c6 = arith.constant 6 : index
    %34 = memref.load %arg0[%c0_6, %c6] : memref<2x8xi32, #tpu.memory_space<smem>>
    %c192_i32 = arith.constant 192 : i32
    %35 = arith.addi %34, %c192_i32 : i32
    %36 = vector.broadcast %35 : i32 to vector<4x256xi32>
    %37 = arith.cmpi eq, %1, %36 : vector<4x256xi32>
    %38 = arith.ori %33, %37 : vector<4x256xi1>
    %c0_7 = arith.constant 0 : index
    %c7 = arith.constant 7 : index
    %39 = memref.load %arg0[%c0_7, %c7] : memref<2x8xi32, #tpu.memory_space<smem>>
    %c224_i32 = arith.constant 224 : i32
    %40 = arith.addi %39, %c224_i32 : i32
    %41 = vector.broadcast %40 : i32 to vector<4x256xi32>
    %42 = arith.cmpi eq, %1, %41 : vector<4x256xi32>
    %43 = arith.ori %38, %42 : vector<4x256xi1>
    %c0_i32_8 = arith.constant 0 : i32
    %44 = vector.broadcast %c0_i32_8 : i32 to vector<4x256xi32>
    %45 = arith.cmpi eq, %0, %44 : vector<4x256xi32>
    %46 = arith.andi %45, %43 : vector<4x256xi1>
    %cst_9 = arith.constant 1.000000e+00 : f32
    %cst_10 = arith.constant 0.000000e+00 : f32
    %47 = vector.broadcast %cst_9 : f32 to vector<4x256xf32>
    %48 = vector.broadcast %cst_10 : f32 to vector<4x256xf32>
    %49 = arith.select %46, %47, %48 : vector<4x256xi1>, vector<4x256xf32>
    %50 = arith.addf %2, %49 : vector<4x256xf32>
    %false_11 = arith.constant false
    %51 = vector.broadcast %false_11 : i1 to vector<4x256xi1>
    %c1_12 = arith.constant 1 : index
    %c0_13 = arith.constant 0 : index
    %52 = memref.load %arg0[%c1_12, %c0_13] : memref<2x8xi32, #tpu.memory_space<smem>>
    %c0_i32_14 = arith.constant 0 : i32
    %53 = arith.addi %52, %c0_i32_14 : i32
    %54 = vector.broadcast %53 : i32 to vector<4x256xi32>
    %55 = arith.cmpi eq, %1, %54 : vector<4x256xi32>
    %56 = arith.ori %51, %55 : vector<4x256xi1>
    %c1_15 = arith.constant 1 : index
    %c1_16 = arith.constant 1 : index
    %57 = memref.load %arg0[%c1_15, %c1_16] : memref<2x8xi32, #tpu.memory_space<smem>>
    %c32_i32_17 = arith.constant 32 : i32
    %58 = arith.addi %57, %c32_i32_17 : i32
    %59 = vector.broadcast %58 : i32 to vector<4x256xi32>
    %60 = arith.cmpi eq, %1, %59 : vector<4x256xi32>
    %61 = arith.ori %56, %60 : vector<4x256xi1>
    %c1_18 = arith.constant 1 : index
    %c2_19 = arith.constant 2 : index
    %62 = memref.load %arg0[%c1_18, %c2_19] : memref<2x8xi32, #tpu.memory_space<smem>>
    %c64_i32_20 = arith.constant 64 : i32
    %63 = arith.addi %62, %c64_i32_20 : i32
    %64 = vector.broadcast %63 : i32 to vector<4x256xi32>
    %65 = arith.cmpi eq, %1, %64 : vector<4x256xi32>
    %66 = arith.ori %61, %65 : vector<4x256xi1>
    %c1_21 = arith.constant 1 : index
    %c3_22 = arith.constant 3 : index
    %67 = memref.load %arg0[%c1_21, %c3_22] : memref<2x8xi32, #tpu.memory_space<smem>>
    %c96_i32_23 = arith.constant 96 : i32
    %68 = arith.addi %67, %c96_i32_23 : i32
    %69 = vector.broadcast %68 : i32 to vector<4x256xi32>
    %70 = arith.cmpi eq, %1, %69 : vector<4x256xi32>
    %71 = arith.ori %66, %70 : vector<4x256xi1>
    %c1_24 = arith.constant 1 : index
    %c4_25 = arith.constant 4 : index
    %72 = memref.load %arg0[%c1_24, %c4_25] : memref<2x8xi32, #tpu.memory_space<smem>>
    %c128_i32_26 = arith.constant 128 : i32
    %73 = arith.addi %72, %c128_i32_26 : i32
    %74 = vector.broadcast %73 : i32 to vector<4x256xi32>
    %75 = arith.cmpi eq, %1, %74 : vector<4x256xi32>
    %76 = arith.ori %71, %75 : vector<4x256xi1>
    %c1_27 = arith.constant 1 : index
    %c5_28 = arith.constant 5 : index
    %77 = memref.load %arg0[%c1_27, %c5_28] : memref<2x8xi32, #tpu.memory_space<smem>>
    %c160_i32_29 = arith.constant 160 : i32
    %78 = arith.addi %77, %c160_i32_29 : i32
    %79 = vector.broadcast %78 : i32 to vector<4x256xi32>
    %80 = arith.cmpi eq, %1, %79 : vector<4x256xi32>
    %81 = arith.ori %76, %80 : vector<4x256xi1>
    %c1_30 = arith.constant 1 : index
    %c6_31 = arith.constant 6 : index
    %82 = memref.load %arg0[%c1_30, %c6_31] : memref<2x8xi32, #tpu.memory_space<smem>>
    %c192_i32_32 = arith.constant 192 : i32
    %83 = arith.addi %82, %c192_i32_32 : i32
    %84 = vector.broadcast %83 : i32 to vector<4x256xi32>
    %85 = arith.cmpi eq, %1, %84 : vector<4x256xi32>
    %86 = arith.ori %81, %85 : vector<4x256xi1>
    %c1_33 = arith.constant 1 : index
    %c7_34 = arith.constant 7 : index
    %87 = memref.load %arg0[%c1_33, %c7_34] : memref<2x8xi32, #tpu.memory_space<smem>>
    %c224_i32_35 = arith.constant 224 : i32
    %88 = arith.addi %87, %c224_i32_35 : i32
    %89 = vector.broadcast %88 : i32 to vector<4x256xi32>
    %90 = arith.cmpi eq, %1, %89 : vector<4x256xi32>
    %91 = arith.ori %86, %90 : vector<4x256xi1>
    %c1_i32 = arith.constant 1 : i32
    %92 = vector.broadcast %c1_i32 : i32 to vector<4x256xi32>
    %93 = arith.cmpi eq, %0, %92 : vector<4x256xi32>
    %94 = arith.andi %93, %91 : vector<4x256xi1>
    %cst_36 = arith.constant 1.000000e+00 : f32
    %cst_37 = arith.constant 0.000000e+00 : f32
    %95 = vector.broadcast %cst_36 : f32 to vector<4x256xf32>
    %96 = vector.broadcast %cst_37 : f32 to vector<4x256xf32>
    %97 = arith.select %94, %95, %96 : vector<4x256xi1>, vector<4x256xf32>
    %98 = arith.addf %50, %97 : vector<4x256xf32>
    %false_38 = arith.constant false
    %99 = vector.broadcast %false_38 : i1 to vector<4x256xi1>
    %c0_39 = arith.constant 0 : index
    %c0_40 = arith.constant 0 : index
    %100 = memref.load %arg1[%c0_39, %c0_40] : memref<2x8xi32, #tpu.memory_space<smem>>
    %c0_i32_41 = arith.constant 0 : i32
    %101 = arith.addi %100, %c0_i32_41 : i32
    %102 = vector.broadcast %101 : i32 to vector<4x256xi32>
    %103 = arith.cmpi eq, %1, %102 : vector<4x256xi32>
    %104 = arith.ori %99, %103 : vector<4x256xi1>
    %c0_42 = arith.constant 0 : index
    %c1_43 = arith.constant 1 : index
    %105 = memref.load %arg1[%c0_42, %c1_43] : memref<2x8xi32, #tpu.memory_space<smem>>
    %c32_i32_44 = arith.constant 32 : i32
    %106 = arith.addi %105, %c32_i32_44 : i32
    %107 = vector.broadcast %106 : i32 to vector<4x256xi32>
    %108 = arith.cmpi eq, %1, %107 : vector<4x256xi32>
    %109 = arith.ori %104, %108 : vector<4x256xi1>
    %c0_45 = arith.constant 0 : index
    %c2_46 = arith.constant 2 : index
    %110 = memref.load %arg1[%c0_45, %c2_46] : memref<2x8xi32, #tpu.memory_space<smem>>
    %c64_i32_47 = arith.constant 64 : i32
    %111 = arith.addi %110, %c64_i32_47 : i32
    %112 = vector.broadcast %111 : i32 to vector<4x256xi32>
    %113 = arith.cmpi eq, %1, %112 : vector<4x256xi32>
    %114 = arith.ori %109, %113 : vector<4x256xi1>
    %c0_48 = arith.constant 0 : index
    %c3_49 = arith.constant 3 : index
    %115 = memref.load %arg1[%c0_48, %c3_49] : memref<2x8xi32, #tpu.memory_space<smem>>
    %c96_i32_50 = arith.constant 96 : i32
    %116 = arith.addi %115, %c96_i32_50 : i32
    %117 = vector.broadcast %116 : i32 to vector<4x256xi32>
    %118 = arith.cmpi eq, %1, %117 : vector<4x256xi32>
    %119 = arith.ori %114, %118 : vector<4x256xi1>
    %c0_51 = arith.constant 0 : index
    %c4_52 = arith.constant 4 : index
    %120 = memref.load %arg1[%c0_51, %c4_52] : memref<2x8xi32, #tpu.memory_space<smem>>
    %c128_i32_53 = arith.constant 128 : i32
    %121 = arith.addi %120, %c128_i32_53 : i32
    %122 = vector.broadcast %121 : i32 to vector<4x256xi32>
    %123 = arith.cmpi eq, %1, %122 : vector<4x256xi32>
    %124 = arith.ori %119, %123 : vector<4x256xi1>
    %c0_54 = arith.constant 0 : index
    %c5_55 = arith.constant 5 : index
    %125 = memref.load %arg1[%c0_54, %c5_55] : memref<2x8xi32, #tpu.memory_space<smem>>
    %c160_i32_56 = arith.constant 160 : i32
    %126 = arith.addi %125, %c160_i32_56 : i32
    %127 = vector.broadcast %126 : i32 to vector<4x256xi32>
    %128 = arith.cmpi eq, %1, %127 : vector<4x256xi32>
    %129 = arith.ori %124, %128 : vector<4x256xi1>
    %c0_57 = arith.constant 0 : index
    %c6_58 = arith.constant 6 : index
    %130 = memref.load %arg1[%c0_57, %c6_58] : memref<2x8xi32, #tpu.memory_space<smem>>
    %c192_i32_59 = arith.constant 192 : i32
    %131 = arith.addi %130, %c192_i32_59 : i32
    %132 = vector.broadcast %131 : i32 to vector<4x256xi32>
    %133 = arith.cmpi eq, %1, %132 : vector<4x256xi32>
    %134 = arith.ori %129, %133 : vector<4x256xi1>
    %c0_60 = arith.constant 0 : index
    %c7_61 = arith.constant 7 : index
    %135 = memref.load %arg1[%c0_60, %c7_61] : memref<2x8xi32, #tpu.memory_space<smem>>
    %c224_i32_62 = arith.constant 224 : i32
    %136 = arith.addi %135, %c224_i32_62 : i32
    %137 = vector.broadcast %136 : i32 to vector<4x256xi32>
    %138 = arith.cmpi eq, %1, %137 : vector<4x256xi32>
    %139 = arith.ori %134, %138 : vector<4x256xi1>
    %c2_i32 = arith.constant 2 : i32
    %140 = vector.broadcast %c2_i32 : i32 to vector<4x256xi32>
    %141 = arith.cmpi eq, %0, %140 : vector<4x256xi32>
    %142 = arith.andi %141, %139 : vector<4x256xi1>
    %cst_63 = arith.constant 1.000000e+00 : f32
    %cst_64 = arith.constant 0.000000e+00 : f32
    %143 = vector.broadcast %cst_63 : f32 to vector<4x256xf32>
    %144 = vector.broadcast %cst_64 : f32 to vector<4x256xf32>
    %145 = arith.select %142, %143, %144 : vector<4x256xi1>, vector<4x256xf32>
    %146 = arith.addf %98, %145 : vector<4x256xf32>
    %false_65 = arith.constant false
    %147 = vector.broadcast %false_65 : i1 to vector<4x256xi1>
    %c1_66 = arith.constant 1 : index
    %c0_67 = arith.constant 0 : index
    %148 = memref.load %arg1[%c1_66, %c0_67] : memref<2x8xi32, #tpu.memory_space<smem>>
    %c0_i32_68 = arith.constant 0 : i32
    %149 = arith.addi %148, %c0_i32_68 : i32
    %150 = vector.broadcast %149 : i32 to vector<4x256xi32>
    %151 = arith.cmpi eq, %1, %150 : vector<4x256xi32>
    %152 = arith.ori %147, %151 : vector<4x256xi1>
    %c1_69 = arith.constant 1 : index
    %c1_70 = arith.constant 1 : index
    %153 = memref.load %arg1[%c1_69, %c1_70] : memref<2x8xi32, #tpu.memory_space<smem>>
    %c32_i32_71 = arith.constant 32 : i32
    %154 = arith.addi %153, %c32_i32_71 : i32
    %155 = vector.broadcast %154 : i32 to vector<4x256xi32>
    %156 = arith.cmpi eq, %1, %155 : vector<4x256xi32>
    %157 = arith.ori %152, %156 : vector<4x256xi1>
    %c1_72 = arith.constant 1 : index
    %c2_73 = arith.constant 2 : index
    %158 = memref.load %arg1[%c1_72, %c2_73] : memref<2x8xi32, #tpu.memory_space<smem>>
    %c64_i32_74 = arith.constant 64 : i32
    %159 = arith.addi %158, %c64_i32_74 : i32
    %160 = vector.broadcast %159 : i32 to vector<4x256xi32>
    %161 = arith.cmpi eq, %1, %160 : vector<4x256xi32>
    %162 = arith.ori %157, %161 : vector<4x256xi1>
    %c1_75 = arith.constant 1 : index
    %c3_76 = arith.constant 3 : index
    %163 = memref.load %arg1[%c1_75, %c3_76] : memref<2x8xi32, #tpu.memory_space<smem>>
    %c96_i32_77 = arith.constant 96 : i32
    %164 = arith.addi %163, %c96_i32_77 : i32
    %165 = vector.broadcast %164 : i32 to vector<4x256xi32>
    %166 = arith.cmpi eq, %1, %165 : vector<4x256xi32>
    %167 = arith.ori %162, %166 : vector<4x256xi1>
    %c1_78 = arith.constant 1 : index
    %c4_79 = arith.constant 4 : index
    %168 = memref.load %arg1[%c1_78, %c4_79] : memref<2x8xi32, #tpu.memory_space<smem>>
    %c128_i32_80 = arith.constant 128 : i32
    %169 = arith.addi %168, %c128_i32_80 : i32
    %170 = vector.broadcast %169 : i32 to vector<4x256xi32>
    %171 = arith.cmpi eq, %1, %170 : vector<4x256xi32>
    %172 = arith.ori %167, %171 : vector<4x256xi1>
    %c1_81 = arith.constant 1 : index
    %c5_82 = arith.constant 5 : index
    %173 = memref.load %arg1[%c1_81, %c5_82] : memref<2x8xi32, #tpu.memory_space<smem>>
    %c160_i32_83 = arith.constant 160 : i32
    %174 = arith.addi %173, %c160_i32_83 : i32
    %175 = vector.broadcast %174 : i32 to vector<4x256xi32>
    %176 = arith.cmpi eq, %1, %175 : vector<4x256xi32>
    %177 = arith.ori %172, %176 : vector<4x256xi1>
    %c1_84 = arith.constant 1 : index
    %c6_85 = arith.constant 6 : index
    %178 = memref.load %arg1[%c1_84, %c6_85] : memref<2x8xi32, #tpu.memory_space<smem>>
    %c192_i32_86 = arith.constant 192 : i32
    %179 = arith.addi %178, %c192_i32_86 : i32
    %180 = vector.broadcast %179 : i32 to vector<4x256xi32>
    %181 = arith.cmpi eq, %1, %180 : vector<4x256xi32>
    %182 = arith.ori %177, %181 : vector<4x256xi1>
    %c1_87 = arith.constant 1 : index
    %c7_88 = arith.constant 7 : index
    %183 = memref.load %arg1[%c1_87, %c7_88] : memref<2x8xi32, #tpu.memory_space<smem>>
    %c224_i32_89 = arith.constant 224 : i32
    %184 = arith.addi %183, %c224_i32_89 : i32
    %185 = vector.broadcast %184 : i32 to vector<4x256xi32>
    %186 = arith.cmpi eq, %1, %185 : vector<4x256xi32>
    %187 = arith.ori %182, %186 : vector<4x256xi1>
    %c3_i32 = arith.constant 3 : i32
    %188 = vector.broadcast %c3_i32 : i32 to vector<4x256xi32>
    %189 = arith.cmpi eq, %0, %188 : vector<4x256xi32>
    %190 = arith.andi %189, %187 : vector<4x256xi1>
    %cst_90 = arith.constant 1.000000e+00 : f32
    %cst_91 = arith.constant 0.000000e+00 : f32
    %191 = vector.broadcast %cst_90 : f32 to vector<4x256xf32>
    %192 = vector.broadcast %cst_91 : f32 to vector<4x256xf32>
    %193 = arith.select %190, %191, %192 : vector<4x256xi1>, vector<4x256xf32>
    %194 = arith.addf %146, %193 : vector<4x256xf32>
    %195 = arith.truncf %194 : vector<4x256xf32> to vector<4x256xbf16>
    %c0_92 = arith.constant 0 : index
    %c0_93 = arith.constant 0 : index
    %196 = vector.load %arg2[%c0_92, %c0_93] : memref<256x384xbf16, #tpu.memory_space<vmem>>, vector<256x384xbf16>
    %cst_94 = arith.constant dense<0.000000e+00> : vector<4x384xf32>
    %197 = tpu.matmul %195, %196, %cst_94 {dimension_numbers = #tpu.dot_dimension_numbers<[1], [0], [0], [1], [0, 0, 1, 1], [], []>} : vector<4x256xbf16>, vector<256x384xbf16>, vector<4x384xf32> -> vector<4x384xf32>
    %c0_95 = arith.constant 0 : index
    %c0_96 = arith.constant 0 : index
    %198 = vector.load %arg3[%c0_95, %c0_96] : memref<1x384xf32, #tpu.memory_space<vmem>>, vector<1x384xf32>
    %199 = vector.broadcast %198 : vector<1x384xf32> to vector<4x384xf32>
    %200 = arith.addf %197, %199 : vector<4x384xf32>
    %201 = vector.extract_strided_slice %200 {offsets = [0, 0], sizes = [2, 384], strides = [1, 1]} : vector<4x384xf32> to vector<2x384xf32>
    %202 = vector.extract_strided_slice %200 {offsets = [2, 0], sizes = [2, 384], strides = [1, 1]} : vector<4x384xf32> to vector<2x384xf32>
    %203 = tpu.concatenate %201, %202 in 1 : vector<2x384xf32>, vector<2x384xf32> -> vector<2x768xf32>
    %c0_97 = arith.constant 0 : index
    %c0_98 = arith.constant 0 : index
    %204 = vector.load %arg6[%c0_97, %c0_98] : memref<2x768xf32, #tpu.memory_space<vmem>>, vector<2x768xf32>
    tpu.vector_store %arg6[%c0_97, %c0_98], %203 {strides = array<i32>} : memref<2x768xf32, #tpu.memory_space<vmem>>, vector<2x768xf32>,
    %c0_99 = arith.constant 0 : index
    %c0_100 = arith.constant 0 : index
    %205 = vector.load %arg4[%c0_99, %c0_100] : memref<768x128xf32, #tpu.memory_space<vmem>>, vector<768x128xf32>
    %cst_101 = arith.constant dense<0.000000e+00> : vector<2x128xf32>
    %206 = tpu.matmul %203, %205, %cst_101 {dimension_numbers = #tpu.dot_dimension_numbers<[1], [0], [0], [1], [0, 0, 1, 1], [], []>} : vector<2x768xf32>, vector<768x128xf32>, vector<2x128xf32> -> vector<2x128xf32>
    %c0_102 = arith.constant 0 : index
    %c0_103 = arith.constant 0 : index
    %207 = vector.load %arg5[%c0_102, %c0_103] : memref<1x128xf32, #tpu.memory_space<vmem>>, vector<1x128xf32>
    %208 = vector.broadcast %207 : vector<1x128xf32> to vector<2x128xf32>
    %209 = arith.addf %206, %208 : vector<2x128xf32>
    %c0_104 = arith.constant 0 : index
    %c0_105 = arith.constant 0 : index
    %210 = vector.load %arg7[%c0_104, %c0_105] : memref<2x128xf32, #tpu.memory_space<vmem>>, vector<2x128xf32>
    tpu.vector_store %arg7[%c0_104, %c0_105], %209 {strides = array<i32>} : memref<2x128xf32, #tpu.memory_space<vmem>>, vector<2x128xf32>,
    return
  }
}

</mosaic_0001>

<llo_original>
// kernel: prot_cnn2_forward.1
$region0: #{prot_cnn2_forward.1}
  #allocation0 [shape = 'u32[]', space=smem, size = 0x4, offset = 0x4, fixed_abs, tag = 'smem constant byte address 0x4 - core index']
  #allocation1 [shape = 'u32[144,128]{1,0:T(1,128)}', space=vmem, size = 0x12000, scoped, tag = 'internal scratch']
  %s0 = inlined_call_operand.vmem [shape: s32[2,8], index: 0, kind: input, shape index: {}]
  %s1 = inlined_call_operand.vmem [shape: s32[2,8], index: 1, kind: input, shape index: {}]
  %s2 = inlined_call_operand.vmem [shape: bf16[256,384], index: 2, kind: input, shape index: {}]
  %s3 = inlined_call_operand.vmem [shape: f32[1,384], index: 3, kind: input, shape index: {}]
  %s4 = inlined_call_operand.vmem [shape: f32[768,128], index: 4, kind: input, shape index: {}]
  %s5 = inlined_call_operand.vmem [shape: f32[1,128], index: 5, kind: input, shape index: {}]
  %s6 = inlined_call_operand.vmem [shape: f32[2,768], index: 6, kind: output, shape index: {0}]
  %s7 = inlined_call_operand.hbm [shape: f32[2,128], index: 7, kind: output, shape index: {1}]
  %8 = xla_tuple %s6, %s7
  %s9 = sld [smem:[#allocation0]]
  $region50: #{prot_cnn2_forward.1} parent=0
    _
  %s11 = ssub.s32 1, %s9
  %s12 = scalar_select 0, %s11, %s9
  $region1: #{prot_cnn2_forward.1} parent=0
    #allocation2 [shape = 'u8[1024]{0}', space=smem, size = 0x400, scoped, tag = 'input window, operand 0, single buffered']
    #allocation3 [shape = 's32[1]{0}', space=sflag, size = 0x4, scoped, tag = 'scoped memory for prot_cnn2_forward.1']
    #allocation4 [shape = 's32[1]{0}', space=sflag, size = 0x4, scoped, tag = 'scoped memory for prot_cnn2_forward.1']
    #allocation5 [shape = 'u8[1024]{0}', space=smem, size = 0x400, scoped, tag = 'input window, operand 1, single buffered']
    #allocation6 [shape = 's32[1]{0}', space=sflag, size = 0x4, scoped, tag = 'scoped memory for prot_cnn2_forward.1']
    #allocation7 [shape = 'u8[1024]{0}', space=vmem, size = 0x400, scoped, tag = 'output window, operand 1, single buffered']
    %13 = vsyncpa [#allocation4], 0
    %14 = vsyncpa [#allocation6], 0
    %15 = vsyncpa [#allocation3], 0
    // Predicated region
    $region2: #{prot_cnn2_forward.1} parent=1 // pred_check
      _
    $region3: #{prot_cnn2_forward.1} parent=1 // pred_check_branch
      %17 = sbr.rel (0) target = $region5
    $region4: #{prot_cnn2_forward.1} parent=1 // pred_region
      %s19 = ssub.s32 32, 32
      %20 = vsyncadd [#allocation4], %s19
      %s22 = sshll.u32 %s0, 4
      %s23 = int_to_ptr.vmem [resolvable:$true] %s22
      %25 = dma.vmem_to_smem %s23, 32, [#allocation2], [#allocation4]
    $region5: #{prot_cnn2_forward.1} parent=1 // pred_fallthru
      _
    // Predicated region
    $region6: #{prot_cnn2_forward.1} parent=1 // pred_check
      _
    $region7: #{prot_cnn2_forward.1} parent=1 // pred_check_branch
      %27 = sbr.rel (0) target = $region9
    $region8: #{prot_cnn2_forward.1} parent=1 // pred_region
      %s29 = ssub.s32 32, 32
      %30 = vsyncadd [#allocation6], %s29
      %s32 = sshll.u32 %s1, 4
      %s33 = int_to_ptr.vmem [resolvable:$true] %s32
      %35 = dma.vmem_to_smem %s33, 32, [#allocation5], [#allocation6]
    $region9: #{prot_cnn2_forward.1} parent=1 // pred_fallthru
      _
    // Predicated region
    $region10: #{prot_cnn2_forward.1} parent=1 // pred_check
      _
    $region11: #{prot_cnn2_forward.1} parent=1 // pred_check_branch
      %37 = sbr.rel (0) target = $region13
    $region12: #{prot_cnn2_forward.1} parent=1 // pred_region
      _
    $region13: #{prot_cnn2_forward.1} parent=1 // pred_fallthru
      _
    // Predicated region
    $region14: #{prot_cnn2_forward.1} parent=1 // pred_check
      _
    $region15: #{prot_cnn2_forward.1} parent=1 // pred_check_branch
      %39 = sbr.rel (0) target = $region17
    $region16: #{prot_cnn2_forward.1} parent=1 // pred_region
      _
    $region17: #{prot_cnn2_forward.1} parent=1 // pred_fallthru
      _
    // Predicated region
    $region18: #{prot_cnn2_forward.1} parent=1 // pred_check
      _
    $region19: #{prot_cnn2_forward.1} parent=1 // pred_check_branch
      %41 = sbr.rel (0) target = $region21
    $region20: #{prot_cnn2_forward.1} parent=1 // pred_region
      _
    $region21: #{prot_cnn2_forward.1} parent=1 // pred_fallthru
      _
    // Predicated region
    $region22: #{prot_cnn2_forward.1} parent=1 // pred_check
      _
    $region23: #{prot_cnn2_forward.1} parent=1 // pred_check_branch
      %43 = sbr.rel (0) target = $region25
    $region24: #{prot_cnn2_forward.1} parent=1 // pred_region
      _
    $region25: #{prot_cnn2_forward.1} parent=1 // pred_fallthru
      _
    // Predicated region
    $region26: #{prot_cnn2_forward.1} parent=1 // pred_check
      _
    $region27: #{prot_cnn2_forward.1} parent=1 // pred_check_branch
      %45 = sbr.rel (0) target = $region29
    $region28: #{prot_cnn2_forward.1} parent=1 // pred_region
      %46 = dma.done [#allocation4], 32
    $region29: #{prot_cnn2_forward.1} parent=1 // pred_fallthru
      _
    // Predicated region
    $region30: #{prot_cnn2_forward.1} parent=1 // pred_check
      _
    $region31: #{prot_cnn2_forward.1} parent=1 // pred_check_branch
      %48 = sbr.rel (0) target = $region33
    $region32: #{prot_cnn2_forward.1} parent=1 // pred_region
      %49 = dma.done [#allocation6], 32
    $region33: #{prot_cnn2_forward.1} parent=1 // pred_fallthru
      _
    %50 = sfence
    %v52 = vlaneseq
    %v53 = vshrl.u32 %v52, 7
    %v54 = vlaneseq
    %v55 = vand.u32 %v54, 127
    %v56 = vadd.s32 %v55, 128
    %s57 = sld [smem:[#allocation2]]
    %v58 = vstv %s57
    %vm59 = vcmp.eq.s32.totalorder %v55, %v58
    %vm60 = vcmp.eq.s32.totalorder %v56, %v58
    %s61 = sld [smem:[#allocation2 + $0x1]]
    %s62 = sadd.s32 %s61, 32
    %v63 = vstv %s62
    %vm64 = vcmp.eq.s32.totalorder %v55, %v63
    %vm65 = vcmp.eq.s32.totalorder %v56, %v63
    %vm66 = vmor %vm59, %vm64
    %vm67 = vmor %vm60, %vm65
    %s68 = sld [smem:[#allocation2 + $0x2]]
    %s69 = sadd.s32 %s68, 64
    %v70 = vstv %s69
    %vm71 = vcmp.eq.s32.totalorder %v55, %v70
    %vm72 = vcmp.eq.s32.totalorder %v56, %v70
    %vm73 = vmor %vm66, %vm71
    %vm74 = vmor %vm67, %vm72
    %s75 = sld [smem:[#allocation2 + $0x3]]
    %s76 = sadd.s32 %s75, 96
    %v77 = vstv %s76
    %vm78 = vcmp.eq.s32.totalorder %v55, %v77
    %vm79 = vcmp.eq.s32.totalorder %v56, %v77
    %vm80 = vmor %vm73, %vm78
    %vm81 = vmor %vm74, %vm79
    %s82 = sld [smem:[#allocation2 + $0x4]]
    %s83 = sadd.s32 %s82, 128
    %v84 = vstv %s83
    %vm85 = vcmp.eq.s32.totalorder %v55, %v84
    %vm86 = vcmp.eq.s32.totalorder %v56, %v84
    %vm87 = vmor %vm80, %vm85
    %vm88 = vmor %vm81, %vm86
    %s89 = sld [smem:[#allocation2 + $0x5]]
    %s90 = sadd.s32 %s89, 160
    %v91 = vstv %s90
    %vm92 = vcmp.eq.s32.totalorder %v55, %v91
    %vm93 = vcmp.eq.s32.totalorder %v56, %v91
    %vm94 = vmor %vm87, %vm92
    %vm95 = vmor %vm88, %vm93
    %s96 = sld [smem:[#allocation2 + $0x6]]
    %s97 = sadd.s32 %s96, 192
    %v98 = vstv %s97
    %vm99 = vcmp.eq.s32.totalorder %v55, %v98
    %vm100 = vcmp.eq.s32.totalorder %v56, %v98
    %vm101 = vmor %vm94, %vm99
    %vm102 = vmor %vm95, %vm100
    %s103 = sld [smem:[#allocation2 + $0x7]]
    %s104 = sadd.s32 %s103, 224
    %v105 = vstv %s104
    %vm106 = vcmp.eq.s32.totalorder %v55, %v105
    %vm107 = vcmp.eq.s32.totalorder %v56, %v105
    %vm108 = vmor %vm101, %vm106
    %vm109 = vmor %vm102, %vm107
    %vm110 = vcmp.eq.s32.totalorder %v53, 0
    %vm111 = vmand %vm110, %vm108
    %vm112 = vmand %vm110, %vm109
    %v113 = vsel %vm111, 1.0, 0.0
    %v114 = vsel %vm112, 1.0, 0.0
    %v115 = vadd.f32 %v113, 0.0
    %v116 = vadd.f32 %v114, 0.0
    %s117 = sld [smem:[#allocation2 + $0x80]]
    %v118 = vstv %s117
    %vm119 = vcmp.eq.s32.totalorder %v55, %v118
    %vm120 = vcmp.eq.s32.totalorder %v56, %v118
    %s121 = sld [smem:[#allocation2 + $0x81]]
    %s122 = sadd.s32 %s121, 32
    %v123 = vstv %s122
    %vm124 = vcmp.eq.s32.totalorder %v55, %v123
    %vm125 = vcmp.eq.s32.totalorder %v56, %v123
    %vm126 = vmor %vm119, %vm124
    %vm127 = vmor %vm120, %vm125
    %s128 = sld [smem:[#allocation2 + $0x82]]
    %s129 = sadd.s32 %s128, 64
    %v130 = vstv %s129
    %vm131 = vcmp.eq.s32.totalorder %v55, %v130
    %vm132 = vcmp.eq.s32.totalorder %v56, %v130
    %vm133 = vmor %vm126, %vm131
    %vm134 = vmor %vm127, %vm132
    %s135 = sld [smem:[#allocation2 + $0x83]]
    %s136 = sadd.s32 %s135, 96
    %v137 = vstv %s136
    %vm138 = vcmp.eq.s32.totalorder %v55, %v137
    %vm139 = vcmp.eq.s32.totalorder %v56, %v137
    %vm140 = vmor %vm133, %vm138
    %vm141 = vmor %vm134, %vm139
    %s142 = sld [smem:[#allocation2 + $0x84]]
    %s143 = sadd.s32 %s142, 128
    %v144 = vstv %s143
    %vm145 = vcmp.eq.s32.totalorder %v55, %v144
    %vm146 = vcmp.eq.s32.totalorder %v56, %v144
    %vm147 = vmor %vm140, %vm145
    %vm148 = vmor %vm141, %vm146
    %s149 = sld [smem:[#allocation2 + $0x85]]
    %s150 = sadd.s32 %s149, 160
    %v151 = vstv %s150
    %vm152 = vcmp.eq.s32.totalorder %v55, %v151
    %vm153 = vcmp.eq.s32.totalorder %v56, %v151
    %vm154 = vmor %vm147, %vm152
    %vm155 = vmor %vm148, %vm153
    %s156 = sld [smem:[#allocation2 + $0x86]]
    %s157 = sadd.s32 %s156, 192
    %v158 = vstv %s157
    %vm159 = vcmp.eq.s32.totalorder %v55, %v158
    %vm160 = vcmp.eq.s32.totalorder %v56, %v158
    %vm161 = vmor %vm154, %vm159
    %vm162 = vmor %vm155, %vm160
    %s163 = sld [smem:[#allocation2 + $0x87]]
    %s164 = sadd.s32 %s163, 224
    %v165 = vstv %s164
    %vm166 = vcmp.eq.s32.totalorder %v55, %v165
    %vm167 = vcmp.eq.s32.totalorder %v56, %v165
    %vm168 = vmor %vm161, %vm166
    %vm169 = vmor %vm162, %vm167
    %vm170 = vcmp.eq.s32.totalorder %v53, 1
    %vm171 = vmand %vm170, %vm168
    %vm172 = vmand %vm170, %vm169
    %v173 = vsel %vm171, 1.0, 0.0
    %v174 = vsel %vm172, 1.0, 0.0
    %v175 = vadd.f32 %v115, %v173
    %v176 = vadd.f32 %v116, %v174
    %s177 = sld [smem:[#allocation5]]
    %v178 = vstv %s177
    %vm179 = vcmp.eq.s32.totalorder %v55, %v178
    %vm180 = vcmp.eq.s32.totalorder %v56, %v178
    %s181 = sld [smem:[#allocation5 + $0x1]]
    %s182 = sadd.s32 %s181, 32
    %v183 = vstv %s182
    %vm184 = vcmp.eq.s32.totalorder %v55, %v183
    %vm185 = vcmp.eq.s32.totalorder %v56, %v183
    %vm186 = vmor %vm179, %vm184
    %vm187 = vmor %vm180, %vm185
    %s188 = sld [smem:[#allocation5 + $0x2]]
    %s189 = sadd.s32 %s188, 64
    %v190 = vstv %s189
    %vm191 = vcmp.eq.s32.totalorder %v55, %v190
    %vm192 = vcmp.eq.s32.totalorder %v56, %v190
    %vm193 = vmor %vm186, %vm191
    %vm194 = vmor %vm187, %vm192
    %s195 = sld [smem:[#allocation5 + $0x3]]
    %s196 = sadd.s32 %s195, 96
    %v197 = vstv %s196
    %vm198 = vcmp.eq.s32.totalorder %v55, %v197
    %vm199 = vcmp.eq.s32.totalorder %v56, %v197
    %vm200 = vmor %vm193, %vm198
    %vm201 = vmor %vm194, %vm199
    %s202 = sld [smem:[#allocation5 + $0x4]]
    %s203 = sadd.s32 %s202, 128
    %v204 = vstv %s203
    %vm205 = vcmp.eq.s32.totalorder %v55, %v204
    %vm206 = vcmp.eq.s32.totalorder %v56, %v204
    %vm207 = vmor %vm200, %vm205
    %vm208 = vmor %vm201, %vm206
    %s209 = sld [smem:[#allocation5 + $0x5]]
    %s210 = sadd.s32 %s209, 160
    %v211 = vstv %s210
    %vm212 = vcmp.eq.s32.totalorder %v55, %v211
    %vm213 = vcmp.eq.s32.totalorder %v56, %v211
    %vm214 = vmor %vm207, %vm212
    %vm215 = vmor %vm208, %vm213
    %s216 = sld [smem:[#allocation5 + $0x6]]
    %s217 = sadd.s32 %s216, 192
    %v218 = vstv %s217
    %vm219 = vcmp.eq.s32.totalorder %v55, %v218
    %vm220 = vcmp.eq.s32.totalorder %v56, %v218
    %vm221 = vmor %vm214, %vm219
    %vm222 = vmor %vm215, %vm220
    %s223 = sld [smem:[#allocation5 + $0x7]]
    %s224 = sadd.s32 %s223, 224
    %v225 = vstv %s224
    %vm226 = vcmp.eq.s32.totalorder %v55, %v225
    %vm227 = vcmp.eq.s32.totalorder %v56, %v225
    %vm228 = vmor %vm221, %vm226
    %vm229 = vmor %vm222, %vm227
    %vm230 = vcmp.eq.s32.totalorder %v53, 2
    %vm231 = vmand %vm230, %vm228
    %vm232 = vmand %vm230, %vm229
    %v233 = vsel %vm231, 1.0, 0.0
    %v234 = vsel %vm232, 1.0, 0.0
    %v235 = vadd.f32 %v175, %v233
    %v236 = vadd.f32 %v176, %v234
    %s237 = sld [smem:[#allocation5 + $0x80]]
    %v238 = vstv %s237
    %vm239 = vcmp.eq.s32.totalorder %v55, %v238
    %vm240 = vcmp.eq.s32.totalorder %v56, %v238
    %s241 = sld [smem:[#allocation5 + $0x81]]
    %s242 = sadd.s32 %s241, 32
    %v243 = vstv %s242
    %vm244 = vcmp.eq.s32.totalorder %v55, %v243
    %vm245 = vcmp.eq.s32.totalorder %v56, %v243
    %vm246 = vmor %vm239, %vm244
    %vm247 = vmor %vm240, %vm245
    %s248 = sld [smem:[#allocation5 + $0x82]]
    %s249 = sadd.s32 %s248, 64
    %v250 = vstv %s249
    %vm251 = vcmp.eq.s32.totalorder %v55, %v250
    %vm252 = vcmp.eq.s32.totalorder %v56, %v250
    %vm253 = vmor %vm246, %vm251
    %vm254 = vmor %vm247, %vm252
    %s255 = sld [smem:[#allocation5 + $0x83]]
    %s256 = sadd.s32 %s255, 96
    %v257 = vstv %s256
    %vm258 = vcmp.eq.s32.totalorder %v55, %v257
    %vm259 = vcmp.eq.s32.totalorder %v56, %v257
    %vm260 = vmor %vm253, %vm258
    %vm261 = vmor %vm254, %vm259
    %s262 = sld [smem:[#allocation5 + $0x84]]
    %s263 = sadd.s32 %s262, 128
    %v264 = vstv %s263
    %vm265 = vcmp.eq.s32.totalorder %v55, %v264
    %vm266 = vcmp.eq.s32.totalorder %v56, %v264
    %vm267 = vmor %vm260, %vm265
    %vm268 = vmor %vm261, %vm266
    %s269 = sld [smem:[#allocation5 + $0x85]]
    %s270 = sadd.s32 %s269, 160
    %v271 = vstv %s270
    %vm272 = vcmp.eq.s32.totalorder %v55, %v271
    %vm273 = vcmp.eq.s32.totalorder %v56, %v271
    %vm274 = vmor %vm267, %vm272
    %vm275 = vmor %vm268, %vm273
    %s276 = sld [smem:[#allocation5 + $0x86]]
    %s277 = sadd.s32 %s276, 192
    %v278 = vstv %s277
    %vm279 = vcmp.eq.s32.totalorder %v55, %v278
    %vm280 = vcmp.eq.s32.totalorder %v56, %v278
    %vm281 = vmor %vm274, %vm279
    %vm282 = vmor %vm275, %vm280
    %s283 = sld [smem:[#allocation5 + $0x87]]
    %s284 = sadd.s32 %s283, 224
    %v285 = vstv %s284
    %vm286 = vcmp.eq.s32.totalorder %v55, %v285
    %vm287 = vcmp.eq.s32.totalorder %v56, %v285
    %vm288 = vmor %vm281, %vm286
    %vm289 = vmor %vm282, %vm287
    %vm290 = vcmp.eq.s32.totalorder %v53, 3
    %vm291 = vmand %vm290, %vm288
    %vm292 = vmand %vm290, %vm289
    %v293 = vsel %vm291, 1.0, 0.0
    %v294 = vsel %vm292, 1.0, 0.0
    %v295 = vadd.f32 %v235, %v293
    %v296 = vadd.f32 %v236, %v294
    %v297 = vpack.c.bf16 %v295, %v295
    %v298 = vpack.c.bf16 %v296, %v296
    %v299 = vld [vmem:[%s2] sm:$0xff]
    %v300 = vld [vmem:[%s2 + $0x8] sm:$0xf]
    %v301 = vld [vmem:[%s2 + $0xc] sm:$0xff]
    %v302 = vld [vmem:[%s2 + $0x14] sm:$0xf]
    %v303 = vld [vmem:[%s2 + $0x18] sm:$0xff]
    %v304 = vld [vmem:[%s2 + $0x20] sm:$0xf]
    %v305 = vld [vmem:[%s2 + $0x24] sm:$0xff]
    %v306 = vld [vmem:[%s2 + $0x2c] sm:$0xf]
    %v307 = vld [vmem:[%s2 + $0x30] sm:$0xff]
    %v308 = vld [vmem:[%s2 + $0x38] sm:$0xf]
    %v309 = vld [vmem:[%s2 + $0x3c] sm:$0xff]
    %v310 = vld [vmem:[%s2 + $0x44] sm:$0xf]
    %v311 = vld [vmem:[%s2 + $0x48] sm:$0xff]
    %v312 = vld [vmem:[%s2 + $0x50] sm:$0xf]
    %v313 = vld [vmem:[%s2 + $0x54] sm:$0xff]
    %v314 = vld [vmem:[%s2 + $0x5c] sm:$0xf]
    %v315 = vld [vmem:[%s2 + $0x60] sm:$0xff]
    %v316 = vld [vmem:[%s2 + $0x68] sm:$0xf]
    %v317 = vld [vmem:[%s2 + $0x6c] sm:$0xff]
    %v318 = vld [vmem:[%s2 + $0x74] sm:$0xf]
    %v319 = vld [vmem:[%s2 + $0x78] sm:$0xff]
    %v320 = vld [vmem:[%s2 + $0x80] sm:$0xf]
    %v321 = vld [vmem:[%s2 + $0x84] sm:$0xff]
    %v322 = vld [vmem:[%s2 + $0x8c] sm:$0xf]
    %v323 = vld [vmem:[%s2 + $0x90] sm:$0xff]
    %v324 = vld [vmem:[%s2 + $0x98] sm:$0xf]
    %v325 = vld [vmem:[%s2 + $0x9c] sm:$0xff]
    %v326 = vld [vmem:[%s2 + $0xa4] sm:$0xf]
    %v327 = vld [vmem:[%s2 + $0xa8] sm:$0xff]
    %v328 = vld [vmem:[%s2 + $0xb0] sm:$0xf]
    %v329 = vld [vmem:[%s2 + $0xb4] sm:$0xff]
    %v330 = vld [vmem:[%s2 + $0xbc] sm:$0xf]
    %v331 = vld [vmem:[%s2 + $0xc0] sm:$0xff]
    %v332 = vld [vmem:[%s2 + $0xc8] sm:$0xf]
    %v333 = vld [vmem:[%s2 + $0xcc] sm:$0xff]
    %v334 = vld [vmem:[%s2 + $0xd4] sm:$0xf]
    %v335 = vld [vmem:[%s2 + $0xd8] sm:$0xff]
    %v336 = vld [vmem:[%s2 + $0xe0] sm:$0xf]
    %v337 = vld [vmem:[%s2 + $0xe4] sm:$0xff]
    %v338 = vld [vmem:[%s2 + $0xec] sm:$0xf]
    %v339 = vld [vmem:[%s2 + $0xf0] sm:$0xff]
    %v340 = vld [vmem:[%s2 + $0xf8] sm:$0xf]
    %v341 = vld [vmem:[%s2 + $0xfc] sm:$0xff]
    %v342 = vld [vmem:[%s2 + $0x104] sm:$0xf]
    %v343 = vld [vmem:[%s2 + $0x108] sm:$0xff]
    %v344 = vld [vmem:[%s2 + $0x110] sm:$0xf]
    %v345 = vld [vmem:[%s2 + $0x114] sm:$0xff]
    %v346 = vld [vmem:[%s2 + $0x11c] sm:$0xf]
    %v347 = vld [vmem:[%s2 + $0x120] sm:$0xff]
    %v348 = vld [vmem:[%s2 + $0x128] sm:$0xf]
    %v349 = vld [vmem:[%s2 + $0x12c] sm:$0xff]
    %v350 = vld [vmem:[%s2 + $0x134] sm:$0xf]
    %v351 = vld [vmem:[%s2 + $0x138] sm:$0xff]
    %v352 = vld [vmem:[%s2 + $0x140] sm:$0xf]
    %v353 = vld [vmem:[%s2 + $0x144] sm:$0xff]
    %v354 = vld [vmem:[%s2 + $0x14c] sm:$0xf]
    %v355 = vld [vmem:[%s2 + $0x150] sm:$0xff]
    %v356 = vld [vmem:[%s2 + $0x158] sm:$0xf]
    %v357 = vld [vmem:[%s2 + $0x15c] sm:$0xff]
    %v358 = vld [vmem:[%s2 + $0x164] sm:$0xf]
    %v359 = vld [vmem:[%s2 + $0x168] sm:$0xff]
    %v360 = vld [vmem:[%s2 + $0x170] sm:$0xf]
    %v361 = vld [vmem:[%s2 + $0x174] sm:$0xff]
    %v362 = vld [vmem:[%s2 + $0x17c] sm:$0xf]
    %v363 = vld [vmem:[%s3] sm:$0x7]
    %v365 = vlaneseq
    %v366 = vshrl.u32 %v365, 7
    %v367 = vsub.s32 0, %v366
    %v368 = vrot.slane %v363, %v367
    %v369 = vlaneseq
    %v370 = vshrl.u32 %v369, 7
    %v371 = vsub.s32 1, %v370
    %v372 = vrot.slane %v363, %v371
    %v373 = vlaneseq
    %v374 = vshrl.u32 %v373, 7
    %v375 = vsub.s32 2, %v374
    %v376 = vrot.slane %v363, %v375
    %v444 = vunpack.c.l.b16 %v299
    %v445 = vunpack.c.h.b16 %v299
    %v446 = vunpack.c.l.b16 %v300
    %v447 = vunpack.c.l.b16 %v301
    %v448 = vunpack.c.h.b16 %v301
    %v449 = vunpack.c.l.b16 %v302
    %v450 = vunpack.c.l.b16 %v303
    %v451 = vunpack.c.h.b16 %v303
    %v452 = vunpack.c.l.b16 %v304
    %v453 = vunpack.c.l.b16 %v305
    %v454 = vunpack.c.h.b16 %v305
    %v455 = vunpack.c.l.b16 %v306
    %v456 = vunpack.c.l.b16 %v307
    %v457 = vunpack.c.h.b16 %v307
    %v458 = vunpack.c.l.b16 %v308
    %v459 = vunpack.c.l.b16 %v309
    %v460 = vunpack.c.h.b16 %v309
    %v461 = vunpack.c.l.b16 %v310
    %v462 = vunpack.c.l.b16 %v311
    %v463 = vunpack.c.h.b16 %v311
    %v464 = vunpack.c.l.b16 %v312
    %v465 = vunpack.c.l.b16 %v313
    %v466 = vunpack.c.h.b16 %v313
    %v467 = vunpack.c.l.b16 %v314
    %v468 = vunpack.c.l.b16 %v315
    %v469 = vunpack.c.h.b16 %v315
    %v470 = vunpack.c.l.b16 %v316
    %v471 = vunpack.c.l.b16 %v317
    %v472 = vunpack.c.h.b16 %v317
    %v473 = vunpack.c.l.b16 %v318
    %v474 = vunpack.c.l.b16 %v319
    %v475 = vunpack.c.h.b16 %v319
    %v476 = vunpack.c.l.b16 %v320
    %v477 = vunpack.c.l.b16 %v321
    %v478 = vunpack.c.h.b16 %v321
    %v479 = vunpack.c.l.b16 %v322
    %v480 = vunpack.c.l.b16 %v323
    %v481 = vunpack.c.h.b16 %v323
    %v482 = vunpack.c.l.b16 %v324
    %v483 = vunpack.c.l.b16 %v325
    %v484 = vunpack.c.h.b16 %v325
    %v485 = vunpack.c.l.b16 %v326
    %v486 = vunpack.c.l.b16 %v327
    %v487 = vunpack.c.h.b16 %v327
    %v488 = vunpack.c.l.b16 %v328
    %v489 = vunpack.c.l.b16 %v329
    %v490 = vunpack.c.h.b16 %v329
    %v491 = vunpack.c.l.b16 %v330
    %v492 = vunpack.c.l.b16 %v331
    %v493 = vunpack.c.h.b16 %v331
    %v494 = vunpack.c.l.b16 %v332
    %v495 = vunpack.c.l.b16 %v333
    %v496 = vunpack.c.h.b16 %v333
    %v497 = vunpack.c.l.b16 %v334
    %v498 = vunpack.c.l.b16 %v335
    %v499 = vunpack.c.h.b16 %v335
    %v500 = vunpack.c.l.b16 %v336
    %v501 = vunpack.c.l.b16 %v337
    %v502 = vunpack.c.h.b16 %v337
    %v503 = vunpack.c.l.b16 %v338
    %v504 = vunpack.c.l.b16 %v339
    %v505 = vunpack.c.h.b16 %v339
    %v506 = vunpack.c.l.b16 %v340
    %v507 = vunpack.c.l.b16 %v341
    %v508 = vunpack.c.h.b16 %v341
    %v509 = vunpack.c.l.b16 %v342
    %v510 = vunpack.c.l.b16 %v343
    %v511 = vunpack.c.h.b16 %v343
    %v512 = vunpack.c.l.b16 %v344
    %v513 = vunpack.c.l.b16 %v345
    %v514 = vunpack.c.h.b16 %v345
    %v515 = vunpack.c.l.b16 %v346
    %v516 = vunpack.c.l.b16 %v347
    %v517 = vunpack.c.h.b16 %v347
    %v518 = vunpack.c.l.b16 %v348
    %v519 = vunpack.c.l.b16 %v349
    %v520 = vunpack.c.h.b16 %v349
    %v521 = vunpack.c.l.b16 %v350
    %v522 = vunpack.c.l.b16 %v351
    %v523 = vunpack.c.h.b16 %v351
    %v524 = vunpack.c.l.b16 %v352
    %v525 = vunpack.c.l.b16 %v353
    %v526 = vunpack.c.h.b16 %v353
    %v527 = vunpack.c.l.b16 %v354
    %v528 = vunpack.c.l.b16 %v355
    %v529 = vunpack.c.h.b16 %v355
    %v530 = vunpack.c.l.b16 %v356
    %v531 = vunpack.c.l.b16 %v357
    %v532 = vunpack.c.h.b16 %v357
    %v533 = vunpack.c.l.b16 %v358
    %v534 = vunpack.c.l.b16 %v359
    %v535 = vunpack.c.h.b16 %v359
    %v536 = vunpack.c.l.b16 %v360
    %v537 = vunpack.c.l.b16 %v361
    %v538 = vunpack.c.h.b16 %v361
    %v539 = vunpack.c.l.b16 %v362
    %v540 = vpack.c.b16 %v447, %v444
    %v541 = vpack.c.b16 %v448, %v445
    %v542 = vpack.c.b16 %v449, %v446
    %v543 = vpack.c.b16 %v453, %v450
    %v544 = vpack.c.b16 %v454, %v451
    %v545 = vpack.c.b16 %v455, %v452
    %v546 = vpack.c.b16 %v459, %v456
    %v547 = vpack.c.b16 %v460, %v457
    %v548 = vpack.c.b16 %v461, %v458
    %v549 = vpack.c.b16 %v465, %v462
    %v550 = vpack.c.b16 %v466, %v463
    %v551 = vpack.c.b16 %v467, %v464
    %v552 = vpack.c.b16 %v471, %v468
    %v553 = vpack.c.b16 %v472, %v469
    %v554 = vpack.c.b16 %v473, %v470
    %v555 = vpack.c.b16 %v477, %v474
    %v556 = vpack.c.b16 %v478, %v475
    %v557 = vpack.c.b16 %v479, %v476
    %v558 = vpack.c.b16 %v483, %v480
    %v559 = vpack.c.b16 %v484, %v481
    %v560 = vpack.c.b16 %v485, %v482
    %v561 = vpack.c.b16 %v489, %v486
    %v562 = vpack.c.b16 %v490, %v487
    %v563 = vpack.c.b16 %v491, %v488
    %v564 = vpack.c.b16 %v495, %v492
    %v565 = vpack.c.b16 %v496, %v493
    %v566 = vpack.c.b16 %v497, %v494
    %v567 = vpack.c.b16 %v501, %v498
    %v568 = vpack.c.b16 %v502, %v499
    %v569 = vpack.c.b16 %v503, %v500
    %v570 = vpack.c.b16 %v507, %v504
    %v571 = vpack.c.b16 %v508, %v505
    %v572 = vpack.c.b16 %v509, %v506
    %v573 = vpack.c.b16 %v513, %v510
    %v574 = vpack.c.b16 %v514, %v511
    %v575 = vpack.c.b16 %v515, %v512
    %v576 = vpack.c.b16 %v519, %v516
    %v577 = vpack.c.b16 %v520, %v517
    %v578 = vpack.c.b16 %v521, %v518
    %v579 = vpack.c.b16 %v525, %v522
    %v580 = vpack.c.b16 %v526, %v523
    %v581 = vpack.c.b16 %v527, %v524
    %v582 = vpack.c.b16 %v531, %v528
    %v583 = vpack.c.b16 %v532, %v529
    %v584 = vpack.c.b16 %v533, %v530
    %v585 = vpack.c.b16 %v537, %v534
    %v586 = vpack.c.b16 %v538, %v535
    %v587 = vpack.c.b16 %v539, %v536
    %636 = vmatprep.subr.bf16.mxu0 %v541
    %637 = vmatpush1.bf16.msra.mxu0 %v540
    %638 = vmatprep.subr.bf16.mxu0 %v544
    %639 = vmatpush1.bf16.msra.mxu0 %v543
    %640 = vmatprep.subr.bf16.mxu0 %v547
    %641 = vmatpush1.bf16.msra.mxu0 %v546
    %642 = vmatprep.subr.bf16.mxu0 %v550
    %643 = vmatpush1.bf16.msra.mxu0 %v549
    %644 = vmatprep.subr.bf16.mxu0 %v553
    %645 = vmatpush1.bf16.msra.mxu0 %v552
    %646 = vmatprep.subr.bf16.mxu0 %v556
    %647 = vmatpush1.bf16.msra.mxu0 %v555
    %648 = vmatprep.subr.bf16.mxu0 %v559
    %649 = vmatpush1.bf16.msra.mxu0 %v558
    %650 = vmatprep.subr.bf16.mxu0 %v562
    %651 = vmatpush1.bf16.msra.mxu0 %v561
    %652 = vmatprep.subr.bf16.mxu0 %v565
    %653 = vmatpush1.bf16.msra.mxu0 %v564
    %654 = vmatprep.subr.bf16.mxu0 %v568
    %655 = vmatpush1.bf16.msra.mxu0 %v567
    %656 = vmatprep.subr.bf16.mxu0 %v571
    %657 = vmatpush1.bf16.msra.mxu0 %v570
    %658 = vmatprep.subr.bf16.mxu0 %v574
    %659 = vmatpush1.bf16.msra.mxu0 %v573
    %660 = vmatprep.subr.bf16.mxu0 %v577
    %661 = vmatpush1.bf16.msra.mxu0 %v576
    %662 = vmatprep.subr.bf16.mxu0 %v580
    %663 = vmatpush1.bf16.msra.mxu0 %v579
    %664 = vmatprep.subr.bf16.mxu0 %v583
    %665 = vmatpush1.bf16.msra.mxu0 %v582
    %666 = vmatprep.subr.bf16.mxu0 %v586
    %667 = vmatpush1.bf16.msra.mxu0 %v585
    %668 = vmatprep.mubr.bf16.mxu0 %v298
    %669 = vmatmul.mubr.bf16.gmra.mrb[0].mxu0 %v297
    %v670 = vpop.f32.mrb[0].mxu0
    %v671 = vadd.f32 %v368, %v670
    %v672 = vpop.f32.mrb[0].mxu0
    %v673 = vadd.f32 %v372, %v672
    %v674 = vpop.f32.mrb[0].mxu0
    %v675 = vpop.f32.mrb[0].mxu0
    %676 = vdwg.mxu0
    %677 = vmatprep.subr.bf16.mxu0 0
    %678 = vmatpush1.bf16.msra.mxu0 %v542
    %679 = vmatprep.subr.bf16.mxu0 0
    %680 = vmatpush1.bf16.msra.mxu0 %v545
    %681 = vmatprep.subr.bf16.mxu0 0
    %682 = vmatpush1.bf16.msra.mxu0 %v548
    %683 = vmatprep.subr.bf16.mxu0 0
    %684 = vmatpush1.bf16.msra.mxu0 %v551
    %685 = vmatprep.subr.bf16.mxu0 0
    %686 = vmatpush1.bf16.msra.mxu0 %v554
    %687 = vmatprep.subr.bf16.mxu0 0
    %688 = vmatpush1.bf16.msra.mxu0 %v557
    %689 = vmatprep.subr.bf16.mxu0 0
    %690 = vmatpush1.bf16.msra.mxu0 %v560
    %691 = vmatprep.subr.bf16.mxu0 0
    %692 = vmatpush1.bf16.msra.mxu0 %v563
    %693 = vmatprep.subr.bf16.mxu0 0
    %694 = vmatpush1.bf16.msra.mxu0 %v566
    %695 = vmatprep.subr.bf16.mxu0 0
    %696 = vmatpush1.bf16.msra.mxu0 %v569
    %697 = vmatprep.subr.bf16.mxu0 0
    %698 = vmatpush1.bf16.msra.mxu0 %v572
    %699 = vmatprep.subr.bf16.mxu0 0
    %700 = vmatpush1.bf16.msra.mxu0 %v575
    %701 = vmatprep.subr.bf16.mxu0 0
    %702 = vmatpush1.bf16.msra.mxu0 %v578
    %703 = vmatprep.subr.bf16.mxu0 0
    %704 = vmatpush1.bf16.msra.mxu0 %v581
    %705 = vmatprep.subr.bf16.mxu0 0
    %706 = vmatpush1.bf16.msra.mxu0 %v584
    %707 = vmatprep.subr.bf16.mxu0 0
    %708 = vmatpush1.bf16.msra.mxu0 %v587
    %709 = vmatprep.mubr.bf16.mxu0 %v298
    %710 = vmatmul.mubr.bf16.gmra.mrb[0].mxu0 %v297
    %v711 = vpop.f32.mrb[0].mxu0
    %v712 = vadd.f32 %v376, %v711
    %v713 = vpop.f32.mrb[0].mxu0
    %v714 = vpop.f32.mrb[0].mxu0
    %v715 = vpop.f32.mrb[0].mxu0
    %716 = vdwg.mxu0
    %v720 = vrot.slane %v671, 2
    %v721 = vrot.slane %v673, 2
    %v722 = vrot.slane %v712, 2
    %v726 = vcombine.low %v671, %v673
    %v727 = vcombine.low %v712, %v720
    %v729 = vunpack.c.l.s4 1983009808
    %v730 = vunpack.c.0.s8 %v729
    %v731 = vlaneseq
    %v732 = vshrl.u32 %v731, 7
    %v733 = vsub.s32 %v730, %v732
    %v734 = vrot.slane %v726, %v733
    %v736 = vunpack.c.l.s4 1983009808
    %v737 = vunpack.c.0.s8 %v736
    %v738 = vlaneseq
    %v739 = vshrl.u32 %v738, 7
    %v740 = vsub.s32 %v737, %v739
    %v741 = vrot.slane %v727, %v740
    %v742 = vcombine.low %v734, %v741
    %v743 = vcombine.low %v721, %v722
    %v745 = vunpack.c.l.s4 1983009808
    %v746 = vunpack.c.0.s8 %v745
    %v747 = vlaneseq
    %v748 = vshrl.u32 %v747, 7
    %v749 = vsub.s32 %v746, %v748
    %v750 = vrot.slane %v743, %v749
    %753 = vst [vmem:[%s6] sm:$0xff] %v742
    %754 = vst [vmem:[%s6 + $0x8] sm:$0xf] %v750
    %v755 = vld [vmem:[%s4] sm:$0xff]
    %v756 = vld [vmem:[%s4 + $0x8] sm:$0xff]
    %v757 = vld [vmem:[%s4 + $0x10] sm:$0xff]
    %v758 = vld [vmem:[%s4 + $0x18] sm:$0xff]
    %v759 = vld [vmem:[%s4 + $0x20] sm:$0xff]
    %v760 = vld [vmem:[%s4 + $0x28] sm:$0xff]
    %v761 = vld [vmem:[%s4 + $0x30] sm:$0xff]
    %v762 = vld [vmem:[%s4 + $0x38] sm:$0xff]
    %v763 = vld [vmem:[%s4 + $0x40] sm:$0xff]
    %v764 = vld [vmem:[%s4 + $0x48] sm:$0xff]
    %v765 = vld [vmem:[%s4 + $0x50] sm:$0xff]
    %v766 = vld [vmem:[%s4 + $0x58] sm:$0xff]
    %v767 = vld [vmem:[%s4 + $0x60] sm:$0xff]
    %v768 = vld [vmem:[%s4 + $0x68] sm:$0xff]
    %v769 = vld [vmem:[%s4 + $0x70] sm:$0xff]
    %v770 = vld [vmem:[%s4 + $0x78] sm:$0xff]
    %v771 = vld [vmem:[%s4 + $0x80] sm:$0xff]
    %v772 = vld [vmem:[%s4 + $0x88] sm:$0xff]
    %v773 = vld [vmem:[%s4 + $0x90] sm:$0xff]
    %v774 = vld [vmem:[%s4 + $0x98] sm:$0xff]
    %v775 = vld [vmem:[%s4 + $0xa0] sm:$0xff]
    %v776 = vld [vmem:[%s4 + $0xa8] sm:$0xff]
    %v777 = vld [vmem:[%s4 + $0xb0] sm:$0xff]
    %v778 = vld [vmem:[%s4 + $0xb8] sm:$0xff]
    %v779 = vld [vmem:[%s4 + $0xc0] sm:$0xff]
    %v780 = vld [vmem:[%s4 + $0xc8] sm:$0xff]
    %v781 = vld [vmem:[%s4 + $0xd0] sm:$0xff]
    %v782 = vld [vmem:[%s4 + $0xd8] sm:$0xff]
    %v783 = vld [vmem:[%s4 + $0xe0] sm:$0xff]
    %v784 = vld [vmem:[%s4 + $0xe8] sm:$0xff]
    %v785 = vld [vmem:[%s4 + $0xf0] sm:$0xff]
    %v786 = vld [vmem:[%s4 + $0xf8] sm:$0xff]
    %v787 = vld [vmem:[%s4 + $0x100] sm:$0xff]
    %v788 = vld [vmem:[%s4 + $0x108] sm:$0xff]
    %v789 = vld [vmem:[%s4 + $0x110] sm:$0xff]
    %v790 = vld [vmem:[%s4 + $0x118] sm:$0xff]
    %v791 = vld [vmem:[%s4 + $0x120] sm:$0xff]
    %v792 = vld [vmem:[%s4 + $0x128] sm:$0xff]
    %v793 = vld [vmem:[%s4 + $0x130] sm:$0xff]
    %v794 = vld [vmem:[%s4 + $0x138] sm:$0xff]
    %v795 = vld [vmem:[%s4 + $0x140] sm:$0xff]
    %v796 = vld [vmem:[%s4 + $0x148] sm:$0xff]
    %v797 = vld [vmem:[%s4 + $0x150] sm:$0xff]
    %v798 = vld [vmem:[%s4 + $0x158] sm:$0xff]
    %v799 = vld [vmem:[%s4 + $0x160] sm:$0xff]
    %v800 = vld [vmem:[%s4 + $0x168] sm:$0xff]
    %v801 = vld [vmem:[%s4 + $0x170] sm:$0xff]
    %v802 = vld [vmem:[%s4 + $0x178] sm:$0xff]
    %v803 = vld [vmem:[%s4 + $0x180] sm:$0xff]
    %v804 = vld [vmem:[%s4 + $0x188] sm:$0xff]
    %v805 = vld [vmem:[%s4 + $0x190] sm:$0xff]
    %v806 = vld [vmem:[%s4 + $0x198] sm:$0xff]
    %v807 = vld [vmem:[%s4 + $0x1a0] sm:$0xff]
    %v808 = vld [vmem:[%s4 + $0x1a8] sm:$0xff]
    %v809 = vld [vmem:[%s4 + $0x1b0] sm:$0xff]
    %v810 = vld [vmem:[%s4 + $0x1b8] sm:$0xff]
    %v811 = vld [vmem:[%s4 + $0x1c0] sm:$0xff]
    %v812 = vld [vmem:[%s4 + $0x1c8] sm:$0xff]
    %v813 = vld [vmem:[%s4 + $0x1d0] sm:$0xff]
    %v814 = vld [vmem:[%s4 + $0x1d8] sm:$0xff]
    %v815 = vld [vmem:[%s4 + $0x1e0] sm:$0xff]
    %v816 = vld [vmem:[%s4 + $0x1e8] sm:$0xff]
    %v817 = vld [vmem:[%s4 + $0x1f0] sm:$0xff]
    %v818 = vld [vmem:[%s4 + $0x1f8] sm:$0xff]
    %v819 = vld [vmem:[%s4 + $0x200] sm:$0xff]
    %v820 = vld [vmem:[%s4 + $0x208] sm:$0xff]
    %v821 = vld [vmem:[%s4 + $0x210] sm:$0xff]
    %v822 = vld [vmem:[%s4 + $0x218] sm:$0xff]
    %v823 = vld [vmem:[%s4 + $0x220] sm:$0xff]
    %v824 = vld [vmem:[%s4 + $0x228] sm:$0xff]
    %v825 = vld [vmem:[%s4 + $0x230] sm:$0xff]
    %v826 = vld [vmem:[%s4 + $0x238] sm:$0xff]
    %v827 = vld [vmem:[%s4 + $0x240] sm:$0xff]
    %v828 = vld [vmem:[%s4 + $0x248] sm:$0xff]
    %v829 = vld [vmem:[%s4 + $0x250] sm:$0xff]
    %v830 = vld [vmem:[%s4 + $0x258] sm:$0xff]
    %v831 = vld [vmem:[%s4 + $0x260] sm:$0xff]
    %v832 = vld [vmem:[%s4 + $0x268] sm:$0xff]
    %v833 = vld [vmem:[%s4 + $0x270] sm:$0xff]
    %v834 = vld [vmem:[%s4 + $0x278] sm:$0xff]
    %v835 = vld [vmem:[%s4 + $0x280] sm:$0xff]
    %v836 = vld [vmem:[%s4 + $0x288] sm:$0xff]
    %v837 = vld [vmem:[%s4 + $0x290] sm:$0xff]
    %v838 = vld [vmem:[%s4 + $0x298] sm:$0xff]
    %v839 = vld [vmem:[%s4 + $0x2a0] sm:$0xff]
    %v840 = vld [vmem:[%s4 + $0x2a8] sm:$0xff]
    %v841 = vld [vmem:[%s4 + $0x2b0] sm:$0xff]
    %v842 = vld [vmem:[%s4 + $0x2b8] sm:$0xff]
    %v843 = vld [vmem:[%s4 + $0x2c0] sm:$0xff]
    %v844 = vld [vmem:[%s4 + $0x2c8] sm:$0xff]
    %v845 = vld [vmem:[%s4 + $0x2d0] sm:$0xff]
    %v846 = vld [vmem:[%s4 + $0x2d8] sm:$0xff]
    %v847 = vld [vmem:[%s4 + $0x2e0] sm:$0xff]
    %v848 = vld [vmem:[%s4 + $0x2e8] sm:$0xff]
    %v849 = vld [vmem:[%s4 + $0x2f0] sm:$0xff]
    %v850 = vld [vmem:[%s4 + $0x2f8] sm:$0xff]
    %v851 = vld [vmem:[%s5] sm:$0x1]
    %v853 = vlaneseq
    %v854 = vshrl.u32 %v853, 7
    %v855 = vsub.s32 0, %v854
    %v856 = vrot.slane %v851, %v855
    %858 = vmatprep.subr.mxu0 0.0
    %859 = vmatpush1.msra.mxu0 %v755
    %860 = vmatprep.subr.mxu0 0.0
    %861 = vmatpush1.msra.mxu0 %v756
    %862 = vmatprep.subr.mxu0 0.0
    %863 = vmatpush1.msra.mxu0 %v757
    %864 = vmatprep.subr.mxu0 0.0
    %865 = vmatpush1.msra.mxu0 %v758
    %866 = vmatprep.subr.mxu0 0.0
    %867 = vmatpush1.msra.mxu0 %v759
    %868 = vmatprep.subr.mxu0 0.0
    %869 = vmatpush1.msra.mxu0 %v760
    %870 = vmatprep.subr.mxu0 0.0
    %871 = vmatpush1.msra.mxu0 %v761
    %872 = vmatprep.subr.mxu0 0.0
    %873 = vmatpush1.msra.mxu0 %v762
    %874 = vmatprep.subr.mxu0 0.0
    %875 = vmatpush1.msra.mxu0 %v763
    %876 = vmatprep.subr.mxu0 0.0
    %877 = vmatpush1.msra.mxu0 %v764
    %878 = vmatprep.subr.mxu0 0.0
    %879 = vmatpush1.msra.mxu0 %v765
    %880 = vmatprep.subr.mxu0 0.0
    %881 = vmatpush1.msra.mxu0 %v766
    %882 = vmatprep.subr.mxu0 0.0
    %883 = vmatpush1.msra.mxu0 %v767
    %884 = vmatprep.subr.mxu0 0.0
    %885 = vmatpush1.msra.mxu0 %v768
    %886 = vmatprep.subr.mxu0 0.0
    %887 = vmatpush1.msra.mxu0 %v769
    %888 = vmatprep.subr.mxu0 0.0
    %889 = vmatpush1.msra.mxu0 %v770
    %890 = vmatprep.subr.mxu0 0.0
    %891 = vmatpush1.msra.mxu0 %v771
    %892 = vmatprep.subr.mxu0 0.0
    %893 = vmatpush1.msra.mxu0 %v772
    %894 = vmatprep.subr.mxu0 0.0
    %895 = vmatpush1.msra.mxu0 %v773
    %896 = vmatprep.subr.mxu0 0.0
    %897 = vmatpush1.msra.mxu0 %v774
    %898 = vmatprep.subr.mxu0 0.0
    %899 = vmatpush1.msra.mxu0 %v775
    %900 = vmatprep.subr.mxu0 0.0
    %901 = vmatpush1.msra.mxu0 %v776
    %902 = vmatprep.subr.mxu0 0.0
    %903 = vmatpush1.msra.mxu0 %v777
    %904 = vmatprep.subr.mxu0 0.0
    %905 = vmatpush1.msra.mxu0 %v778
    %906 = vmatprep.subr.mxu0 0.0
    %907 = vmatpush1.msra.mxu0 %v779
    %908 = vmatprep.subr.mxu0 0.0
    %909 = vmatpush1.msra.mxu0 %v780
    %910 = vmatprep.subr.mxu0 0.0
    %911 = vmatpush1.msra.mxu0 %v781
    %912 = vmatprep.subr.mxu0 0.0
    %913 = vmatpush1.msra.mxu0 %v782
    %914 = vmatprep.subr.mxu0 0.0
    %915 = vmatpush1.msra.mxu0 %v783
    %916 = vmatprep.subr.mxu0 0.0
    %917 = vmatpush1.msra.mxu0 %v784
    %918 = vmatprep.subr.mxu0 0.0
    %919 = vmatpush1.msra.mxu0 %v785
    %920 = vmatprep.subr.mxu0 0.0
    %921 = vmatpush1.msra.mxu0 %v786
    %922 = vmatprep.mubr.f32.mxu0 %v673
    %923 = vmatmul.mubr.f32.gmra.mrb[0].mxu0 %v671
    %v924 = vpop.f32.mrb[0].mxu0
    %v925 = vadd.f32 %v856, %v924
    %v926 = vpop.f32.mrb[0].mxu0
    %927 = vdwg.mxu0
    %928 = vmatprep.subr.mxu0 0.0
    %929 = vmatpush1.msra.mxu0 %v787
    %930 = vmatprep.subr.mxu0 0.0
    %931 = vmatpush1.msra.mxu0 %v788
    %932 = vmatprep.subr.mxu0 0.0
    %933 = vmatpush1.msra.mxu0 %v789
    %934 = vmatprep.subr.mxu0 0.0
    %935 = vmatpush1.msra.mxu0 %v790
    %936 = vmatprep.subr.mxu0 0.0
    %937 = vmatpush1.msra.mxu0 %v791
    %938 = vmatprep.subr.mxu0 0.0
    %939 = vmatpush1.msra.mxu0 %v792
    %940 = vmatprep.subr.mxu0 0.0
    %941 = vmatpush1.msra.mxu0 %v793
    %942 = vmatprep.subr.mxu0 0.0
    %943 = vmatpush1.msra.mxu0 %v794
    %944 = vmatprep.subr.mxu0 0.0
    %945 = vmatpush1.msra.mxu0 %v795
    %946 = vmatprep.subr.mxu0 0.0
    %947 = vmatpush1.msra.mxu0 %v796
    %948 = vmatprep.subr.mxu0 0.0
    %949 = vmatpush1.msra.mxu0 %v797
    %950 = vmatprep.subr.mxu0 0.0
    %951 = vmatpush1.msra.mxu0 %v798
    %952 = vmatprep.subr.mxu0 0.0
    %953 = vmatpush1.msra.mxu0 %v799
    %954 = vmatprep.subr.mxu0 0.0
    %955 = vmatpush1.msra.mxu0 %v800
    %956 = vmatprep.subr.mxu0 0.0
    %957 = vmatpush1.msra.mxu0 %v801
    %958 = vmatprep.subr.mxu0 0.0
    %959 = vmatpush1.msra.mxu0 %v802
    %960 = vmatprep.subr.mxu0 0.0
    %961 = vmatpush1.msra.mxu0 %v803
    %962 = vmatprep.subr.mxu0 0.0
    %963 = vmatpush1.msra.mxu0 %v804
    %964 = vmatprep.subr.mxu0 0.0
    %965 = vmatpush1.msra.mxu0 %v805
    %966 = vmatprep.subr.mxu0 0.0
    %967 = vmatpush1.msra.mxu0 %v806
    %968 = vmatprep.subr.mxu0 0.0
    %969 = vmatpush1.msra.mxu0 %v807
    %970 = vmatprep.subr.mxu0 0.0
    %971 = vmatpush1.msra.mxu0 %v808
    %972 = vmatprep.subr.mxu0 0.0
    %973 = vmatpush1.msra.mxu0 %v809
    %974 = vmatprep.subr.mxu0 0.0
    %975 = vmatpush1.msra.mxu0 %v810
    %976 = vmatprep.subr.mxu0 0.0
    %977 = vmatpush1.msra.mxu0 %v811
    %978 = vmatprep.subr.mxu0 0.0
    %979 = vmatpush1.msra.mxu0 %v812
    %980 = vmatprep.subr.mxu0 0.0
    %981 = vmatpush1.msra.mxu0 %v813
    %982 = vmatprep.subr.mxu0 0.0
    %983 = vmatpush1.msra.mxu0 %v814
    %984 = vmatprep.subr.mxu0 0.0
    %985 = vmatpush1.msra.mxu0 %v815
    %986 = vmatprep.subr.mxu0 0.0
    %987 = vmatpush1.msra.mxu0 %v816
    %988 = vmatprep.subr.mxu0 0.0
    %989 = vmatpush1.msra.mxu0 %v817
    %990 = vmatprep.subr.mxu0 0.0
    %991 = vmatpush1.msra.mxu0 %v818
    %992 = vmatprep.mubr.f32.mxu0 %v720
    %993 = vmatmul.mubr.f32.gmra.mrb[0].mxu0 %v712
    %v994 = vpop.f32.mrb[0].mxu0
    %v995 = vadd.f32 %v925, %v994
    %v996 = vpop.f32.mrb[0].mxu0
    %997 = vdwg.mxu0
    %998 = vmatprep.subr.mxu0 0.0
    %999 = vmatpush1.msra.mxu0 %v819
    %1000 = vmatprep.subr.mxu0 0.0
    %1001 = vmatpush1.msra.mxu0 %v820
    %1002 = vmatprep.subr.mxu0 0.0
    %1003 = vmatpush1.msra.mxu0 %v821
    %1004 = vmatprep.subr.mxu0 0.0
    %1005 = vmatpush1.msra.mxu0 %v822
    %1006 = vmatprep.subr.mxu0 0.0
    %1007 = vmatpush1.msra.mxu0 %v823
    %1008 = vmatprep.subr.mxu0 0.0
    %1009 = vmatpush1.msra.mxu0 %v824
    %1010 = vmatprep.subr.mxu0 0.0
    %1011 = vmatpush1.msra.mxu0 %v825
    %1012 = vmatprep.subr.mxu0 0.0
    %1013 = vmatpush1.msra.mxu0 %v826
    %1014 = vmatprep.subr.mxu0 0.0
    %1015 = vmatpush1.msra.mxu0 %v827
    %1016 = vmatprep.subr.mxu0 0.0
    %1017 = vmatpush1.msra.mxu0 %v828
    %1018 = vmatprep.subr.mxu0 0.0
    %1019 = vmatpush1.msra.mxu0 %v829
    %1020 = vmatprep.subr.mxu0 0.0
    %1021 = vmatpush1.msra.mxu0 %v830
    %1022 = vmatprep.subr.mxu0 0.0
    %1023 = vmatpush1.msra.mxu0 %v831
    %1024 = vmatprep.subr.mxu0 0.0
    %1025 = vmatpush1.msra.mxu0 %v832
    %1026 = vmatprep.subr.mxu0 0.0
    %1027 = vmatpush1.msra.mxu0 %v833
    %1028 = vmatprep.subr.mxu0 0.0
    %1029 = vmatpush1.msra.mxu0 %v834
    %1030 = vmatprep.subr.mxu0 0.0
    %1031 = vmatpush1.msra.mxu0 %v835
    %1032 = vmatprep.subr.mxu0 0.0
    %1033 = vmatpush1.msra.mxu0 %v836
    %1034 = vmatprep.subr.mxu0 0.0
    %1035 = vmatpush1.msra.mxu0 %v837
    %1036 = vmatprep.subr.mxu0 0.0
    %1037 = vmatpush1.msra.mxu0 %v838
    %1038 = vmatprep.subr.mxu0 0.0
    %1039 = vmatpush1.msra.mxu0 %v839
    %1040 = vmatprep.subr.mxu0 0.0
    %1041 = vmatpush1.msra.mxu0 %v840
    %1042 = vmatprep.subr.mxu0 0.0
    %1043 = vmatpush1.msra.mxu0 %v841
    %1044 = vmatprep.subr.mxu0 0.0
    %1045 = vmatpush1.msra.mxu0 %v842
    %1046 = vmatprep.subr.mxu0 0.0
    %1047 = vmatpush1.msra.mxu0 %v843
    %1048 = vmatprep.subr.mxu0 0.0
    %1049 = vmatpush1.msra.mxu0 %v844
    %1050 = vmatprep.subr.mxu0 0.0
    %1051 = vmatpush1.msra.mxu0 %v845
    %1052 = vmatprep.subr.mxu0 0.0
    %1053 = vmatpush1.msra.mxu0 %v846
    %1054 = vmatprep.subr.mxu0 0.0
    %1055 = vmatpush1.msra.mxu0 %v847
    %1056 = vmatprep.subr.mxu0 0.0
    %1057 = vmatpush1.msra.mxu0 %v848
    %1058 = vmatprep.subr.mxu0 0.0
    %1059 = vmatpush1.msra.mxu0 %v849
    %1060 = vmatprep.subr.mxu0 0.0
    %1061 = vmatpush1.msra.mxu0 %v850
    %1062 = vmatprep.mubr.f32.mxu0 %v722
    %1063 = vmatmul.mubr.f32.gmra.mrb[0].mxu0 %v721
    %v1064 = vpop.f32.mrb[0].mxu0
    %v1065 = vadd.f32 %v995, %v1064
    %v1066 = vpop.f32.mrb[0].mxu0
    %1067 = vdwg.mxu0
    %1068 = vst [vmem:[#allocation7] sm:$0x3] %v1065
    // Predicated region
    $region34: #{prot_cnn2_forward.1} parent=1 // pred_check
      _
    $region35: #{prot_cnn2_forward.1} parent=1 // pred_check_branch
      %1070 = sbr.rel (0) target = $region37
    $region36: #{prot_cnn2_forward.1} parent=1 // pred_region
      _
    $region37: #{prot_cnn2_forward.1} parent=1 // pred_fallthru
      _
    // Predicated region
    $region38: #{prot_cnn2_forward.1} parent=1 // pred_check
      _
    $region39: #{prot_cnn2_forward.1} parent=1 // pred_check_branch
      %1072 = sbr.rel (0) target = $region41
    $region40: #{prot_cnn2_forward.1} parent=1 // pred_region
      %s1074 = ssub.s32 32, 32
      %1075 = vsyncadd [#allocation3], %s1074
      %s1077 = sshll.u32 [#allocation7], 4
      %s1078 = int_to_ptr.vmem [resolvable:$true] %s1077
      %1080 = dma.vmem_to_hbm [thread:$0]  %s1078, 32, %s7, [#allocation3]
    $region41: #{prot_cnn2_forward.1} parent=1 // pred_fallthru
      _
    // Predicated region
    $region42: #{prot_cnn2_forward.1} parent=1 // pred_check
      _
    $region43: #{prot_cnn2_forward.1} parent=1 // pred_check_branch
      %1082 = sbr.rel (0) target = $region45
    $region44: #{prot_cnn2_forward.1} parent=1 // pred_region
      _
    $region45: #{prot_cnn2_forward.1} parent=1 // pred_fallthru
      _
    // Predicated region
    $region46: #{prot_cnn2_forward.1} parent=1 // pred_check
      _
    $region47: #{prot_cnn2_forward.1} parent=1 // pred_check_branch
      %1084 = sbr.rel (0) target = $region49
    $region48: #{prot_cnn2_forward.1} parent=1 // pred_region
      %1085 = dma.done [#allocation3], 32
    $region49: #{prot_cnn2_forward.1} parent=1 // pred_fallthru
      _
    %1086 = vsyncpa [#allocation3], 1
    %1087 = vsyncpa [#allocation4], 1
    %1088 = vsyncpa [#allocation6], 1

</llo_original>
